<compile_context>
chip_gen: v6e
topology: v6e:2x2x1
jax: 0.10.0
libtpu: 0.0.40
codegen_flags: <defaults>
</compile_context>

<pallas_src>
import functools

import jax
import jax.numpy as jnp
from jax.experimental import pallas as pl
from jax.experimental.pallas import tpu as pltpu

# ---- module hyper-parameters (small, consistent with the forward pass) ----
FEATURE_DIMENSION = 4     # PointerNet input_dim
EMBEDDING_DIM = 16        # embedding_dimension
HIDDEN_DIM = 32           # hidden_dimension
LSTM_LAYERS = 1           # lstm_layers_num
BATCH = 2
SEQ = 8
SUBLANES = 8              # pad batch to a full sublane group


def cnet_kernel(x_ref,                       # (S*Bp, F)  time-major, bf16
                w_x_ref, b_x_ref,            # (F, 4H) bf16, (1, 4H) f32
                w_hh_t_ref,                  # (H, 4H) bf16
                w_fcc_t_ref, b_fcc_ref,      # (H, H) bf16, (1, H) f32
                w_out_ref, b_out_ref,        # (1, H) f32, (1, 1) f32
                value_ref,                   # (Bp, 1) f32
                *, seq_len):
    sb = x_ref.shape[0]
    Bp = sb // seq_len                       # padded batch = 8 (one vreg row group)
    H = w_hh_t_ref.shape[0]

    # Recurrent weights stay resident (bf16) across the whole recurrence.
    w_hh_t = w_hh_t_ref[...]

    # One batched bf16 matmul (f32 accumulate) for ALL input-to-gate
    # contributions (embedding folded in) — hoisted off the serial chain.
    gates_x = jnp.dot(x_ref[...], w_x_ref[...],
                      preferred_element_type=jnp.float32) + b_x_ref[...]

    h = jnp.zeros((Bp, H), jnp.float32)
    c = jnp.zeros((Bp, H), jnp.float32)

    # Fully unrolled recurrence: every slice below is a static, vreg-aligned
    # (8, 128) slice and all 8 steps are visible to the scheduler at once.
    for t in range(seq_len):
        pre = gates_x[t * Bp:(t + 1) * Bp, :] + jnp.dot(
            h.astype(jnp.bfloat16), w_hh_t,
            preferred_element_type=jnp.float32)                  # (Bp, 4H) f32
        # Single full-width EUP push per step; the cell-gate pre-activation
        # was pre-scaled by 2 in the wrapper so tanh(x) = 2*sigmoid(2x) - 1.
        s = jax.nn.sigmoid(pre)
        # PyTorch LSTM gate order: input, forget, cell, output
        i = s[:, 0:H]
        f = s[:, H:2 * H]
        g = 2.0 * s[:, 2 * H:3 * H] - 1.0                        # == tanh (VPU)
        o = s[:, 3 * H:4 * H]
        c = f * c + i * g
        h = o * jnp.tanh(c)                                      # (Bp, H) EUP push

    # value head: fcc -> relu -> out
    x1 = jnp.dot(h.astype(jnp.bfloat16), w_fcc_t_ref[...],
                 preferred_element_type=jnp.float32) + b_fcc_ref[...]
    x_relu = jnp.maximum(x1, 0.0)
    # (Bp,H) @ (H,1) would waste an MXU push for one output column: use a VPU
    # multiply + cross-lane reduce instead (f32).
    value = jnp.sum(x_relu * w_out_ref[...], axis=-1,
                    keepdims=True) + b_out_ref[...]
    value_ref[...] = value.astype(value_ref.dtype)


def make_params(key):
    F, E, H = FEATURE_DIMENSION, EMBEDDING_DIM, HIDDEN_DIM
    ks = jax.random.split(key, 11)
    p = {
        # PointerNet embedding Linear(F -> E)
        "w_emb": 0.1 * jax.random.normal(ks[0], (E, F), jnp.float32),
        "b_emb": 0.1 * jax.random.normal(ks[1], (1, E), jnp.float32),
        # LSTM layer 0 (E -> H), PyTorch shapes (4H, E) / (4H, H)
        "w_ih": 0.1 * jax.random.normal(ks[2], (4 * H, E), jnp.float32),
        "w_hh": 0.1 * jax.random.normal(ks[3], (4 * H, H), jnp.float32),
        "b_ih": 0.1 * jax.random.normal(ks[4], (1, 4 * H), jnp.float32),
        "b_hh": 0.1 * jax.random.normal(ks[5], (1, 4 * H), jnp.float32),
        # CNet.fcc: Linear(H, H), weight ~ N(0, 0.1)
        "w_fcc": 0.1 * jax.random.normal(ks[6], (H, H), jnp.float32),
        "b_fcc": 0.1 * jax.random.normal(ks[7], (1, H), jnp.float32),
        # CNet.out: Linear(H, 1), weight ~ N(0, 0.1)
        "w_out": 0.1 * jax.random.normal(ks[8], (1, H), jnp.float32),
        "b_out": 0.1 * jax.random.normal(ks[9], (1, 1), jnp.float32),
    }
    return p


def cnet_forward(state, params):
    """state: (B, S, FEATURE_DIMENSION) float32 -> value (B, 1)."""
    B, S, F = state.shape
    H = HIDDEN_DIM
    # Pad batch up to a full sublane group so per-step gate slices inside the
    # kernel are whole (8, 128) vregs.
    Bp = max(SUBLANES, ((B + SUBLANES - 1) // SUBLANES) * SUBLANES)

    hi = jax.lax.Precision.HIGHEST

    # Fold the linear embedding into the input-to-gate projection (one-time
    # parameter prep, done in XLA outside the kernel, full f32 accuracy).
    w_x = jnp.dot(params["w_emb"].T, params["w_ih"].T, precision=hi)    # (F, 4H)
    b_x = (jnp.dot(params["b_emb"], params["w_ih"].T, precision=hi)
           + params["b_ih"] + params["b_hh"])                           # (1, 4H)
    w_hh_t = params["w_hh"].T                                           # (H, 4H)

    # tanh(x) = 2*sigmoid(2x) - 1: pre-scale the cell-gate (g) columns by 2 so
    # the kernel needs only ONE sigmoid over the full gate vreg per step.
    g_scale = jnp.ones((4 * H,), jnp.float32).at[2 * H:3 * H].set(2.0)
    w_x = w_x * g_scale
    b_x = b_x * g_scale
    w_hh_t = w_hh_t * g_scale

    # bf16 MXU operands (single-pass matmul); accumulation stays f32 in-kernel.
    w_x_bf = w_x.astype(jnp.bfloat16)
    w_hh_t_bf = w_hh_t.astype(jnp.bfloat16)
    w_fcc_t_bf = params["w_fcc"].T.astype(jnp.bfloat16)

    # Time-major, batch padded to Bp, flattened to (S*Bp, F): each step's gate
    # slice in the kernel is one contiguous, sublane-aligned vreg.
    x_tm = jnp.zeros((S, Bp, F), jnp.float32).at[:, :B, :].set(
        jnp.transpose(state, (1, 0, 2)))
    x_tm = x_tm.reshape(S * Bp, F).astype(jnp.bfloat16)

    args = (
        x_tm,
        w_x_bf, b_x,
        w_hh_t_bf,
        w_fcc_t_bf, params["b_fcc"],
        params["w_out"], params["b_out"],
    )

    # Advisory cost hint so XLA schedules this tiny custom call sensibly.
    flops = (2 * S * Bp * F * 4 * H       # input-to-gates matmul
             + 2 * S * Bp * H * 4 * H     # recurrent matmuls
             + 2 * Bp * H * H             # fcc
             + 2 * Bp * H)                # out (mul + reduce)
    transcendentals = S * Bp * 5 * H      # sigmoid(4H) + tanh(H) per batch-step
    bytes_accessed = (2 * (x_tm.size + w_x_bf.size + w_hh_t_bf.size
                           + w_fcc_t_bf.size)                     # bf16
                      + 4 * (b_x.size + params["b_fcc"].size
                             + params["w_out"].size + params["b_out"].size
                             + Bp * 1))                            # f32

    vmem = pl.BlockSpec(memory_space=pltpu.MemorySpace.VMEM)
    value_padded = pl.pallas_call(
        functools.partial(cnet_kernel, seq_len=S),
        out_shape=jax.ShapeDtypeStruct((Bp, 1), jnp.float32),
        in_specs=[vmem] * len(args),
        out_specs=vmem,
        cost_estimate=pl.CostEstimate(flops=flops,
                                      transcendentals=transcendentals,
                                      bytes_accessed=bytes_accessed),
    )(*args)
    return value_padded[:B]


def cnet_reference(state, params):
    """Pure-JAX f32 reference of the same math (for a sanity check)."""
    H = HIDDEN_DIM
    B, S, F = state.shape
    emb = state @ params["w_emb"].T + params["b_emb"]          # (B, S, E)
    h = jnp.zeros((B, H), jnp.float32)
    c = jnp.zeros((B, H), jnp.float32)
    for t in range(S):
        gates = (emb[:, t, :] @ params["w_ih"].T + params["b_ih"]
                 + h @ params["w_hh"].T + params["b_hh"])
        i = jax.nn.sigmoid(gates[:, 0:H])
        f = jax.nn.sigmoid(gates[:, H:2 * H])
        g = jnp.tanh(gates[:, 2 * H:3 * H])
        o = jax.nn.sigmoid(gates[:, 3 * H:4 * H])
        c = f * c + i * g
        h = o * jnp.tanh(c)
    x1 = jnp.maximum(h @ params["w_fcc"].T + params["b_fcc"], 0.0)
    return x1 @ params["w_out"].T + params["b_out"]


if __name__ == "__main__":
    key = jax.random.PRNGKey(0)
    k_state, k_params = jax.random.split(key)
    state = jax.random.normal(
        k_state, (BATCH, SEQ, FEATURE_DIMENSION), jnp.float32)
    params = make_params(k_params)

    value = cnet_forward(state, params)
    value = jax.block_until_ready(value)

    ref = jax.block_until_ready(cnet_reference(state, params))
    assert value.shape == (BATCH, 1)
    # Tolerance accounts for the bf16 MXU operands (f32 accumulation); any
    # functional bug (gate order, bias fold, ...) would be orders of magnitude
    # larger than this.
    assert jnp.allclose(value, ref, rtol=1e-2, atol=1e-2), (value, ref)

    print("KERNEL_OK")
</pallas_src>

<mosaic_0001>
module attributes {stable_mosaic.version = 11 : i64} {
  func.func @cnet_kernel(%arg0: memref<64x4xbf16, #tpu.memory_space<vmem>>, %arg1: memref<4x128xbf16, #tpu.memory_space<vmem>>, %arg2: memref<1x128xf32, #tpu.memory_space<vmem>>, %arg3: memref<32x128xbf16, #tpu.memory_space<vmem>>, %arg4: memref<32x32xbf16, #tpu.memory_space<vmem>>, %arg5: memref<1x32xf32, #tpu.memory_space<vmem>>, %arg6: memref<1x32xf32, #tpu.memory_space<vmem>>, %arg7: memref<1x1xf32, #tpu.memory_space<vmem>>, %arg8: memref<8x1xf32, #tpu.memory_space<vmem>>) attributes {dimension_semantics = [], scalar_prefetch = 0 : i64, scratch_operands = 0 : i64, tpu.core_type = #tpu.core_type<tc>} {
    %c0 = arith.constant 0 : index
    %c0_0 = arith.constant 0 : index
    %0 = vector.load %arg3[%c0, %c0_0] : memref<32x128xbf16, #tpu.memory_space<vmem>>, vector<32x128xbf16>
    %c0_1 = arith.constant 0 : index
    %c0_2 = arith.constant 0 : index
    %1 = vector.load %arg0[%c0_1, %c0_2] : memref<64x4xbf16, #tpu.memory_space<vmem>>, vector<64x4xbf16>
    %c0_3 = arith.constant 0 : index
    %c0_4 = arith.constant 0 : index
    %2 = vector.load %arg1[%c0_3, %c0_4] : memref<4x128xbf16, #tpu.memory_space<vmem>>, vector<4x128xbf16>
    %cst = arith.constant dense<0.000000e+00> : vector<64x128xf32>
    %3 = tpu.matmul %1, %2, %cst {dimension_numbers = #tpu.dot_dimension_numbers<[1], [0], [0], [1], [0, 0, 1, 1], [], []>} : vector<64x4xbf16>, vector<4x128xbf16>, vector<64x128xf32> -> vector<64x128xf32>
    %c0_5 = arith.constant 0 : index
    %c0_6 = arith.constant 0 : index
    %4 = vector.load %arg2[%c0_5, %c0_6] : memref<1x128xf32, #tpu.memory_space<vmem>>, vector<1x128xf32>
    %5 = vector.broadcast %4 : vector<1x128xf32> to vector<64x128xf32>
    %6 = arith.addf %3, %5 : vector<64x128xf32>
    %cst_7 = arith.constant 0.000000e+00 : f32
    %7 = vector.broadcast %cst_7 : f32 to vector<8x32xf32>
    %cst_8 = arith.constant 0.000000e+00 : f32
    %8 = vector.broadcast %cst_8 : f32 to vector<8x32xf32>
    %9 = vector.extract_strided_slice %6 {offsets = [0, 0], sizes = [8, 128], strides = [1, 1]} : vector<64x128xf32> to vector<8x128xf32>
    %10 = arith.truncf %7 : vector<8x32xf32> to vector<8x32xbf16>
    %cst_9 = arith.constant dense<0.000000e+00> : vector<8x128xf32>
    %11 = tpu.matmul %10, %0, %cst_9 {dimension_numbers = #tpu.dot_dimension_numbers<[1], [0], [0], [1], [0, 0, 1, 1], [], []>} : vector<8x32xbf16>, vector<32x128xbf16>, vector<8x128xf32> -> vector<8x128xf32>
    %12 = arith.addf %9, %11 : vector<8x128xf32>
    %13 = arith.negf %12 : vector<8x128xf32>
    %14 = math.exp %13 : vector<8x128xf32>
    %cst_10 = arith.constant 1.000000e+00 : f32
    %15 = vector.broadcast %cst_10 : f32 to vector<8x128xf32>
    %16 = arith.addf %15, %14 : vector<8x128xf32>
    %17 = arith.divf %15, %16 : vector<8x128xf32>
    %18 = vector.extract_strided_slice %17 {offsets = [0, 0], sizes = [8, 32], strides = [1, 1]} : vector<8x128xf32> to vector<8x32xf32>
    %19 = vector.extract_strided_slice %17 {offsets = [0, 32], sizes = [8, 32], strides = [1, 1]} : vector<8x128xf32> to vector<8x32xf32>
    %20 = vector.extract_strided_slice %17 {offsets = [0, 64], sizes = [8, 32], strides = [1, 1]} : vector<8x128xf32> to vector<8x32xf32>
    %cst_11 = arith.constant 2.000000e+00 : f32
    %21 = vector.broadcast %cst_11 : f32 to vector<8x32xf32>
    %22 = arith.mulf %21, %20 : vector<8x32xf32>
    %cst_12 = arith.constant 1.000000e+00 : f32
    %23 = vector.broadcast %cst_12 : f32 to vector<8x32xf32>
    %24 = arith.subf %22, %23 : vector<8x32xf32>
    %25 = vector.extract_strided_slice %17 {offsets = [0, 96], sizes = [8, 32], strides = [1, 1]} : vector<8x128xf32> to vector<8x32xf32>
    %26 = arith.mulf %19, %8 : vector<8x32xf32>
    %27 = arith.mulf %18, %24 : vector<8x32xf32>
    %28 = arith.addf %26, %27 : vector<8x32xf32>
    %29 = math.tanh %28 : vector<8x32xf32>
    %30 = arith.mulf %25, %29 : vector<8x32xf32>
    %31 = vector.extract_strided_slice %6 {offsets = [8, 0], sizes = [8, 128], strides = [1, 1]} : vector<64x128xf32> to vector<8x128xf32>
    %32 = arith.truncf %30 : vector<8x32xf32> to vector<8x32xbf16>
    %cst_13 = arith.constant dense<0.000000e+00> : vector<8x128xf32>
    %33 = tpu.matmul %32, %0, %cst_13 {dimension_numbers = #tpu.dot_dimension_numbers<[1], [0], [0], [1], [0, 0, 1, 1], [], []>} : vector<8x32xbf16>, vector<32x128xbf16>, vector<8x128xf32> -> vector<8x128xf32>
    %34 = arith.addf %31, %33 : vector<8x128xf32>
    %35 = arith.negf %34 : vector<8x128xf32>
    %36 = math.exp %35 : vector<8x128xf32>
    %cst_14 = arith.constant 1.000000e+00 : f32
    %37 = vector.broadcast %cst_14 : f32 to vector<8x128xf32>
    %38 = arith.addf %37, %36 : vector<8x128xf32>
    %39 = arith.divf %37, %38 : vector<8x128xf32>
    %40 = vector.extract_strided_slice %39 {offsets = [0, 0], sizes = [8, 32], strides = [1, 1]} : vector<8x128xf32> to vector<8x32xf32>
    %41 = vector.extract_strided_slice %39 {offsets = [0, 32], sizes = [8, 32], strides = [1, 1]} : vector<8x128xf32> to vector<8x32xf32>
    %42 = vector.extract_strided_slice %39 {offsets = [0, 64], sizes = [8, 32], strides = [1, 1]} : vector<8x128xf32> to vector<8x32xf32>
    %cst_15 = arith.constant 2.000000e+00 : f32
    %43 = vector.broadcast %cst_15 : f32 to vector<8x32xf32>
    %44 = arith.mulf %43, %42 : vector<8x32xf32>
    %cst_16 = arith.constant 1.000000e+00 : f32
    %45 = vector.broadcast %cst_16 : f32 to vector<8x32xf32>
    %46 = arith.subf %44, %45 : vector<8x32xf32>
    %47 = vector.extract_strided_slice %39 {offsets = [0, 96], sizes = [8, 32], strides = [1, 1]} : vector<8x128xf32> to vector<8x32xf32>
    %48 = arith.mulf %41, %28 : vector<8x32xf32>
    %49 = arith.mulf %40, %46 : vector<8x32xf32>
    %50 = arith.addf %48, %49 : vector<8x32xf32>
    %51 = math.tanh %50 : vector<8x32xf32>
    %52 = arith.mulf %47, %51 : vector<8x32xf32>
    %53 = vector.extract_strided_slice %6 {offsets = [16, 0], sizes = [8, 128], strides = [1, 1]} : vector<64x128xf32> to vector<8x128xf32>
    %54 = arith.truncf %52 : vector<8x32xf32> to vector<8x32xbf16>
    %cst_17 = arith.constant dense<0.000000e+00> : vector<8x128xf32>
    %55 = tpu.matmul %54, %0, %cst_17 {dimension_numbers = #tpu.dot_dimension_numbers<[1], [0], [0], [1], [0, 0, 1, 1], [], []>} : vector<8x32xbf16>, vector<32x128xbf16>, vector<8x128xf32> -> vector<8x128xf32>
    %56 = arith.addf %53, %55 : vector<8x128xf32>
    %57 = arith.negf %56 : vector<8x128xf32>
    %58 = math.exp %57 : vector<8x128xf32>
    %cst_18 = arith.constant 1.000000e+00 : f32
    %59 = vector.broadcast %cst_18 : f32 to vector<8x128xf32>
    %60 = arith.addf %59, %58 : vector<8x128xf32>
    %61 = arith.divf %59, %60 : vector<8x128xf32>
    %62 = vector.extract_strided_slice %61 {offsets = [0, 0], sizes = [8, 32], strides = [1, 1]} : vector<8x128xf32> to vector<8x32xf32>
    %63 = vector.extract_strided_slice %61 {offsets = [0, 32], sizes = [8, 32], strides = [1, 1]} : vector<8x128xf32> to vector<8x32xf32>
    %64 = vector.extract_strided_slice %61 {offsets = [0, 64], sizes = [8, 32], strides = [1, 1]} : vector<8x128xf32> to vector<8x32xf32>
    %cst_19 = arith.constant 2.000000e+00 : f32
    %65 = vector.broadcast %cst_19 : f32 to vector<8x32xf32>
    %66 = arith.mulf %65, %64 : vector<8x32xf32>
    %cst_20 = arith.constant 1.000000e+00 : f32
    %67 = vector.broadcast %cst_20 : f32 to vector<8x32xf32>
    %68 = arith.subf %66, %67 : vector<8x32xf32>
    %69 = vector.extract_strided_slice %61 {offsets = [0, 96], sizes = [8, 32], strides = [1, 1]} : vector<8x128xf32> to vector<8x32xf32>
    %70 = arith.mulf %63, %50 : vector<8x32xf32>
    %71 = arith.mulf %62, %68 : vector<8x32xf32>
    %72 = arith.addf %70, %71 : vector<8x32xf32>
    %73 = math.tanh %72 : vector<8x32xf32>
    %74 = arith.mulf %69, %73 : vector<8x32xf32>
    %75 = vector.extract_strided_slice %6 {offsets = [24, 0], sizes = [8, 128], strides = [1, 1]} : vector<64x128xf32> to vector<8x128xf32>
    %76 = arith.truncf %74 : vector<8x32xf32> to vector<8x32xbf16>
    %cst_21 = arith.constant dense<0.000000e+00> : vector<8x128xf32>
    %77 = tpu.matmul %76, %0, %cst_21 {dimension_numbers = #tpu.dot_dimension_numbers<[1], [0], [0], [1], [0, 0, 1, 1], [], []>} : vector<8x32xbf16>, vector<32x128xbf16>, vector<8x128xf32> -> vector<8x128xf32>
    %78 = arith.addf %75, %77 : vector<8x128xf32>
    %79 = arith.negf %78 : vector<8x128xf32>
    %80 = math.exp %79 : vector<8x128xf32>
    %cst_22 = arith.constant 1.000000e+00 : f32
    %81 = vector.broadcast %cst_22 : f32 to vector<8x128xf32>
    %82 = arith.addf %81, %80 : vector<8x128xf32>
    %83 = arith.divf %81, %82 : vector<8x128xf32>
    %84 = vector.extract_strided_slice %83 {offsets = [0, 0], sizes = [8, 32], strides = [1, 1]} : vector<8x128xf32> to vector<8x32xf32>
    %85 = vector.extract_strided_slice %83 {offsets = [0, 32], sizes = [8, 32], strides = [1, 1]} : vector<8x128xf32> to vector<8x32xf32>
    %86 = vector.extract_strided_slice %83 {offsets = [0, 64], sizes = [8, 32], strides = [1, 1]} : vector<8x128xf32> to vector<8x32xf32>
    %cst_23 = arith.constant 2.000000e+00 : f32
    %87 = vector.broadcast %cst_23 : f32 to vector<8x32xf32>
    %88 = arith.mulf %87, %86 : vector<8x32xf32>
    %cst_24 = arith.constant 1.000000e+00 : f32
    %89 = vector.broadcast %cst_24 : f32 to vector<8x32xf32>
    %90 = arith.subf %88, %89 : vector<8x32xf32>
    %91 = vector.extract_strided_slice %83 {offsets = [0, 96], sizes = [8, 32], strides = [1, 1]} : vector<8x128xf32> to vector<8x32xf32>
    %92 = arith.mulf %85, %72 : vector<8x32xf32>
    %93 = arith.mulf %84, %90 : vector<8x32xf32>
    %94 = arith.addf %92, %93 : vector<8x32xf32>
    %95 = math.tanh %94 : vector<8x32xf32>
    %96 = arith.mulf %91, %95 : vector<8x32xf32>
    %97 = vector.extract_strided_slice %6 {offsets = [32, 0], sizes = [8, 128], strides = [1, 1]} : vector<64x128xf32> to vector<8x128xf32>
    %98 = arith.truncf %96 : vector<8x32xf32> to vector<8x32xbf16>
    %cst_25 = arith.constant dense<0.000000e+00> : vector<8x128xf32>
    %99 = tpu.matmul %98, %0, %cst_25 {dimension_numbers = #tpu.dot_dimension_numbers<[1], [0], [0], [1], [0, 0, 1, 1], [], []>} : vector<8x32xbf16>, vector<32x128xbf16>, vector<8x128xf32> -> vector<8x128xf32>
    %100 = arith.addf %97, %99 : vector<8x128xf32>
    %101 = arith.negf %100 : vector<8x128xf32>
    %102 = math.exp %101 : vector<8x128xf32>
    %cst_26 = arith.constant 1.000000e+00 : f32
    %103 = vector.broadcast %cst_26 : f32 to vector<8x128xf32>
    %104 = arith.addf %103, %102 : vector<8x128xf32>
    %105 = arith.divf %103, %104 : vector<8x128xf32>
    %106 = vector.extract_strided_slice %105 {offsets = [0, 0], sizes = [8, 32], strides = [1, 1]} : vector<8x128xf32> to vector<8x32xf32>
    %107 = vector.extract_strided_slice %105 {offsets = [0, 32], sizes = [8, 32], strides = [1, 1]} : vector<8x128xf32> to vector<8x32xf32>
    %108 = vector.extract_strided_slice %105 {offsets = [0, 64], sizes = [8, 32], strides = [1, 1]} : vector<8x128xf32> to vector<8x32xf32>
    %cst_27 = arith.constant 2.000000e+00 : f32
    %109 = vector.broadcast %cst_27 : f32 to vector<8x32xf32>
    %110 = arith.mulf %109, %108 : vector<8x32xf32>
    %cst_28 = arith.constant 1.000000e+00 : f32
    %111 = vector.broadcast %cst_28 : f32 to vector<8x32xf32>
    %112 = arith.subf %110, %111 : vector<8x32xf32>
    %113 = vector.extract_strided_slice %105 {offsets = [0, 96], sizes = [8, 32], strides = [1, 1]} : vector<8x128xf32> to vector<8x32xf32>
    %114 = arith.mulf %107, %94 : vector<8x32xf32>
    %115 = arith.mulf %106, %112 : vector<8x32xf32>
    %116 = arith.addf %114, %115 : vector<8x32xf32>
    %117 = math.tanh %116 : vector<8x32xf32>
    %118 = arith.mulf %113, %117 : vector<8x32xf32>
    %119 = vector.extract_strided_slice %6 {offsets = [40, 0], sizes = [8, 128], strides = [1, 1]} : vector<64x128xf32> to vector<8x128xf32>
    %120 = arith.truncf %118 : vector<8x32xf32> to vector<8x32xbf16>
    %cst_29 = arith.constant dense<0.000000e+00> : vector<8x128xf32>
    %121 = tpu.matmul %120, %0, %cst_29 {dimension_numbers = #tpu.dot_dimension_numbers<[1], [0], [0], [1], [0, 0, 1, 1], [], []>} : vector<8x32xbf16>, vector<32x128xbf16>, vector<8x128xf32> -> vector<8x128xf32>
    %122 = arith.addf %119, %121 : vector<8x128xf32>
    %123 = arith.negf %122 : vector<8x128xf32>
    %124 = math.exp %123 : vector<8x128xf32>
    %cst_30 = arith.constant 1.000000e+00 : f32
    %125 = vector.broadcast %cst_30 : f32 to vector<8x128xf32>
    %126 = arith.addf %125, %124 : vector<8x128xf32>
    %127 = arith.divf %125, %126 : vector<8x128xf32>
    %128 = vector.extract_strided_slice %127 {offsets = [0, 0], sizes = [8, 32], strides = [1, 1]} : vector<8x128xf32> to vector<8x32xf32>
    %129 = vector.extract_strided_slice %127 {offsets = [0, 32], sizes = [8, 32], strides = [1, 1]} : vector<8x128xf32> to vector<8x32xf32>
    %130 = vector.extract_strided_slice %127 {offsets = [0, 64], sizes = [8, 32], strides = [1, 1]} : vector<8x128xf32> to vector<8x32xf32>
    %cst_31 = arith.constant 2.000000e+00 : f32
    %131 = vector.broadcast %cst_31 : f32 to vector<8x32xf32>
    %132 = arith.mulf %131, %130 : vector<8x32xf32>
    %cst_32 = arith.constant 1.000000e+00 : f32
    %133 = vector.broadcast %cst_32 : f32 to vector<8x32xf32>
    %134 = arith.subf %132, %133 : vector<8x32xf32>
    %135 = vector.extract_strided_slice %127 {offsets = [0, 96], sizes = [8, 32], strides = [1, 1]} : vector<8x128xf32> to vector<8x32xf32>
    %136 = arith.mulf %129, %116 : vector<8x32xf32>
    %137 = arith.mulf %128, %134 : vector<8x32xf32>
    %138 = arith.addf %136, %137 : vector<8x32xf32>
    %139 = math.tanh %138 : vector<8x32xf32>
    %140 = arith.mulf %135, %139 : vector<8x32xf32>
    %141 = vector.extract_strided_slice %6 {offsets = [48, 0], sizes = [8, 128], strides = [1, 1]} : vector<64x128xf32> to vector<8x128xf32>
    %142 = arith.truncf %140 : vector<8x32xf32> to vector<8x32xbf16>
    %cst_33 = arith.constant dense<0.000000e+00> : vector<8x128xf32>
    %143 = tpu.matmul %142, %0, %cst_33 {dimension_numbers = #tpu.dot_dimension_numbers<[1], [0], [0], [1], [0, 0, 1, 1], [], []>} : vector<8x32xbf16>, vector<32x128xbf16>, vector<8x128xf32> -> vector<8x128xf32>
    %144 = arith.addf %141, %143 : vector<8x128xf32>
    %145 = arith.negf %144 : vector<8x128xf32>
    %146 = math.exp %145 : vector<8x128xf32>
    %cst_34 = arith.constant 1.000000e+00 : f32
    %147 = vector.broadcast %cst_34 : f32 to vector<8x128xf32>
    %148 = arith.addf %147, %146 : vector<8x128xf32>
    %149 = arith.divf %147, %148 : vector<8x128xf32>
    %150 = vector.extract_strided_slice %149 {offsets = [0, 0], sizes = [8, 32], strides = [1, 1]} : vector<8x128xf32> to vector<8x32xf32>
    %151 = vector.extract_strided_slice %149 {offsets = [0, 32], sizes = [8, 32], strides = [1, 1]} : vector<8x128xf32> to vector<8x32xf32>
    %152 = vector.extract_strided_slice %149 {offsets = [0, 64], sizes = [8, 32], strides = [1, 1]} : vector<8x128xf32> to vector<8x32xf32>
    %cst_35 = arith.constant 2.000000e+00 : f32
    %153 = vector.broadcast %cst_35 : f32 to vector<8x32xf32>
    %154 = arith.mulf %153, %152 : vector<8x32xf32>
    %cst_36 = arith.constant 1.000000e+00 : f32
    %155 = vector.broadcast %cst_36 : f32 to vector<8x32xf32>
    %156 = arith.subf %154, %155 : vector<8x32xf32>
    %157 = vector.extract_strided_slice %149 {offsets = [0, 96], sizes = [8, 32], strides = [1, 1]} : vector<8x128xf32> to vector<8x32xf32>
    %158 = arith.mulf %151, %138 : vector<8x32xf32>
    %159 = arith.mulf %150, %156 : vector<8x32xf32>
    %160 = arith.addf %158, %159 : vector<8x32xf32>
    %161 = math.tanh %160 : vector<8x32xf32>
    %162 = arith.mulf %157, %161 : vector<8x32xf32>
    %163 = vector.extract_strided_slice %6 {offsets = [56, 0], sizes = [8, 128], strides = [1, 1]} : vector<64x128xf32> to vector<8x128xf32>
    %164 = arith.truncf %162 : vector<8x32xf32> to vector<8x32xbf16>
    %cst_37 = arith.constant dense<0.000000e+00> : vector<8x128xf32>
    %165 = tpu.matmul %164, %0, %cst_37 {dimension_numbers = #tpu.dot_dimension_numbers<[1], [0], [0], [1], [0, 0, 1, 1], [], []>} : vector<8x32xbf16>, vector<32x128xbf16>, vector<8x128xf32> -> vector<8x128xf32>
    %166 = arith.addf %163, %165 : vector<8x128xf32>
    %167 = arith.negf %166 : vector<8x128xf32>
    %168 = math.exp %167 : vector<8x128xf32>
    %cst_38 = arith.constant 1.000000e+00 : f32
    %169 = vector.broadcast %cst_38 : f32 to vector<8x128xf32>
    %170 = arith.addf %169, %168 : vector<8x128xf32>
    %171 = arith.divf %169, %170 : vector<8x128xf32>
    %172 = vector.extract_strided_slice %171 {offsets = [0, 0], sizes = [8, 32], strides = [1, 1]} : vector<8x128xf32> to vector<8x32xf32>
    %173 = vector.extract_strided_slice %171 {offsets = [0, 32], sizes = [8, 32], strides = [1, 1]} : vector<8x128xf32> to vector<8x32xf32>
    %174 = vector.extract_strided_slice %171 {offsets = [0, 64], sizes = [8, 32], strides = [1, 1]} : vector<8x128xf32> to vector<8x32xf32>
    %cst_39 = arith.constant 2.000000e+00 : f32
    %175 = vector.broadcast %cst_39 : f32 to vector<8x32xf32>
    %176 = arith.mulf %175, %174 : vector<8x32xf32>
    %cst_40 = arith.constant 1.000000e+00 : f32
    %177 = vector.broadcast %cst_40 : f32 to vector<8x32xf32>
    %178 = arith.subf %176, %177 : vector<8x32xf32>
    %179 = vector.extract_strided_slice %171 {offsets = [0, 96], sizes = [8, 32], strides = [1, 1]} : vector<8x128xf32> to vector<8x32xf32>
    %180 = arith.mulf %173, %160 : vector<8x32xf32>
    %181 = arith.mulf %172, %178 : vector<8x32xf32>
    %182 = arith.addf %180, %181 : vector<8x32xf32>
    %183 = math.tanh %182 : vector<8x32xf32>
    %184 = arith.mulf %179, %183 : vector<8x32xf32>
    %185 = arith.truncf %184 : vector<8x32xf32> to vector<8x32xbf16>
    %c0_41 = arith.constant 0 : index
    %c0_42 = arith.constant 0 : index
    %186 = vector.load %arg4[%c0_41, %c0_42] : memref<32x32xbf16, #tpu.memory_space<vmem>>, vector<32x32xbf16>
    %cst_43 = arith.constant dense<0.000000e+00> : vector<8x32xf32>
    %187 = tpu.matmul %185, %186, %cst_43 {dimension_numbers = #tpu.dot_dimension_numbers<[1], [0], [0], [1], [0, 0, 1, 1], [], []>} : vector<8x32xbf16>, vector<32x32xbf16>, vector<8x32xf32> -> vector<8x32xf32>
    %c0_44 = arith.constant 0 : index
    %c0_45 = arith.constant 0 : index
    %188 = vector.load %arg5[%c0_44, %c0_45] : memref<1x32xf32, #tpu.memory_space<vmem>>, vector<1x32xf32>
    %189 = vector.broadcast %188 : vector<1x32xf32> to vector<8x32xf32>
    %190 = arith.addf %187, %189 : vector<8x32xf32>
    %cst_46 = arith.constant 0.000000e+00 : f32
    %191 = vector.broadcast %cst_46 : f32 to vector<8x32xf32>
    %192 = arith.maximumf %190, %191 : vector<8x32xf32>
    %c0_47 = arith.constant 0 : index
    %c0_48 = arith.constant 0 : index
    %193 = vector.load %arg6[%c0_47, %c0_48] : memref<1x32xf32, #tpu.memory_space<vmem>>, vector<1x32xf32>
    %194 = vector.broadcast %193 : vector<1x32xf32> to vector<8x32xf32>
    %195 = arith.mulf %192, %194 : vector<8x32xf32>
    %cst_49 = arith.constant dense<0.000000e+00> : vector<8xf32>
    %196 = vector.multi_reduction <add>, %195, %cst_49 [1] : vector<8x32xf32> to vector<8xf32>
    %197 = vector.shape_cast %196 : vector<8xf32> to vector<8x1xf32>
    %c0_50 = arith.constant 0 : index
    %c0_51 = arith.constant 0 : index
    %198 = vector.load %arg7[%c0_50, %c0_51] : memref<1x1xf32, #tpu.memory_space<vmem>>, vector<1x1xf32>
    %199 = vector.broadcast %198 : vector<1x1xf32> to vector<8x1xf32>
    %200 = arith.addf %197, %199 : vector<8x1xf32>
    %c0_52 = arith.constant 0 : index
    %c0_53 = arith.constant 0 : index
    %201 = vector.load %arg8[%c0_52, %c0_53] : memref<8x1xf32, #tpu.memory_space<vmem>>, vector<8x1xf32>
    tpu.vector_store %arg8[%c0_52, %c0_53], %200 {strides = array<i32>} : memref<8x1xf32, #tpu.memory_space<vmem>>, vector<8x1xf32>,
    return
  }
}

</mosaic_0001>

<llo_original>
// kernel: tpu_custom_call.1
$region0: #{tpu_custom_call.1}
  #allocation0 [shape = 'u32[]', space=smem, size = 0x4, offset = 0x4, fixed_abs, tag = 'smem constant byte address 0x4 - core index']
  #allocation1 [shape = 'u32[144,128]{1,0:T(1,128)}', space=vmem, size = 0x12000, scoped, tag = 'internal scratch']
  #allocation2 [shape = 'f32[1,1]{1,0:T(1,128)S(1)}', space=vmem, size = 0x200, scoped, tag = 'scoped memory for tpu_custom_call.1']
  %s0 = inlined_call_operand.vmem [shape: bf16[64,4], index: 0, kind: input, shape index: {}]
  %s1 = inlined_call_operand.vmem [shape: bf16[4,128], index: 1, kind: input, shape index: {}]
  %s2 = inlined_call_operand.vmem [shape: f32[1,128], index: 2, kind: input, shape index: {}]
  %s3 = inlined_call_operand.vmem [shape: bf16[32,128], index: 3, kind: input, shape index: {}]
  %s4 = inlined_call_operand.vmem [shape: bf16[32,32], index: 4, kind: input, shape index: {}]
  %s5 = inlined_call_operand.vmem [shape: f32[1,32], index: 5, kind: input, shape index: {}]
  %s6 = inlined_call_operand.vmem [shape: f32[1,32], index: 6, kind: input, shape index: {}]
  %s7 = inlined_call_operand.<no memory space> [shape: f32[1,1], index: 7, kind: input, shape index: {}]
  %s8 = inlined_call_operand.vmem [shape: f32[8,1], index: 8, kind: output, shape index: {}]
  %s9 = sld [smem:[#allocation0]]
  $region42: #{tpu_custom_call.1} parent=0
    _
  %s11 = ssub.s32 1, %s9
  %s12 = scalar_select 0, %s11, %s9
  %v13 = vstv %s7
  %14 = vst [vmem:[#allocation2] sm:$0x1] %v13
  // Predicated region
  $region2: #{tpu_custom_call.1} parent=0 // pred_check
    _
  $region3: #{tpu_custom_call.1} parent=0 // pred_check_branch
    %16 = sbr.rel (0) target = $region5
  $region4: #{tpu_custom_call.1} parent=0 // pred_region
    _
  $region5: #{tpu_custom_call.1} parent=0 // pred_fallthru
    _
  // Predicated region
  $region6: #{tpu_custom_call.1} parent=0 // pred_check
    _
  $region7: #{tpu_custom_call.1} parent=0 // pred_check_branch
    %18 = sbr.rel (0) target = $region9
  $region8: #{tpu_custom_call.1} parent=0 // pred_region
    _
  $region9: #{tpu_custom_call.1} parent=0 // pred_fallthru
    _
  // Predicated region
  $region10: #{tpu_custom_call.1} parent=0 // pred_check
    _
  $region11: #{tpu_custom_call.1} parent=0 // pred_check_branch
    %20 = sbr.rel (0) target = $region13
  $region12: #{tpu_custom_call.1} parent=0 // pred_region
    _
  $region13: #{tpu_custom_call.1} parent=0 // pred_fallthru
    _
  // Predicated region
  $region14: #{tpu_custom_call.1} parent=0 // pred_check
    _
  $region15: #{tpu_custom_call.1} parent=0 // pred_check_branch
    %22 = sbr.rel (0) target = $region17
  $region16: #{tpu_custom_call.1} parent=0 // pred_region
    _
  $region17: #{tpu_custom_call.1} parent=0 // pred_fallthru
    _
  // Predicated region
  $region18: #{tpu_custom_call.1} parent=0 // pred_check
    _
  $region19: #{tpu_custom_call.1} parent=0 // pred_check_branch
    %24 = sbr.rel (0) target = $region21
  $region20: #{tpu_custom_call.1} parent=0 // pred_region
    _
  $region21: #{tpu_custom_call.1} parent=0 // pred_fallthru
    _
  // Predicated region
  $region22: #{tpu_custom_call.1} parent=0 // pred_check
    _
  $region23: #{tpu_custom_call.1} parent=0 // pred_check_branch
    %26 = sbr.rel (0) target = $region25
  $region24: #{tpu_custom_call.1} parent=0 // pred_region
    _
  $region25: #{tpu_custom_call.1} parent=0 // pred_fallthru
    _
  // Predicated region
  $region26: #{tpu_custom_call.1} parent=0 // pred_check
    _
  $region27: #{tpu_custom_call.1} parent=0 // pred_check_branch
    %28 = sbr.rel (0) target = $region29
  $region28: #{tpu_custom_call.1} parent=0 // pred_region
    _
  $region29: #{tpu_custom_call.1} parent=0 // pred_fallthru
    _
  // Predicated region
  $region30: #{tpu_custom_call.1} parent=0 // pred_check
    _
  $region31: #{tpu_custom_call.1} parent=0 // pred_check_branch
    %30 = sbr.rel (0) target = $region33
  $region32: #{tpu_custom_call.1} parent=0 // pred_region
    _
  $region33: #{tpu_custom_call.1} parent=0 // pred_fallthru
    _
  %v32 = vld [vmem:[%s3] sm:$0xf]
  %v33 = vld [vmem:[%s3 + $0x4] sm:$0xf]
  %v34 = vld [vmem:[%s3 + $0x8] sm:$0xf]
  %v35 = vld [vmem:[%s3 + $0xc] sm:$0xf]
  %v36 = vld [vmem:[%s0] sm:$0xf]
  %v37 = vld [vmem:[%s0 + $0x4] sm:$0xf]
  %v38 = vld [vmem:[%s0 + $0x8] sm:$0xf]
  %v39 = vld [vmem:[%s0 + $0xc] sm:$0xf]
  %v40 = vld [vmem:[%s0 + $0x10] sm:$0xf]
  %v41 = vld [vmem:[%s0 + $0x14] sm:$0xf]
  %v42 = vld [vmem:[%s0 + $0x18] sm:$0xf]
  %v43 = vld [vmem:[%s0 + $0x1c] sm:$0xf]
  %v44 = vld [vmem:[%s1] sm:$0x3]
  %v45 = vld [vmem:[%s2] sm:$0x1]
  %v47 = vlaneseq
  %v48 = vshrl.u32 %v47, 7
  %v49 = vsub.s32 0, %v48
  %v50 = vrot.slane %v45, %v49
  %v60 = vunpack.c.l.b16 %v36
  %v61 = vunpack.c.l.b16 %v37
  %v62 = vunpack.c.l.b16 %v38
  %v63 = vunpack.c.l.b16 %v39
  %v64 = vunpack.c.l.b16 %v40
  %v65 = vunpack.c.l.b16 %v41
  %v66 = vunpack.c.l.b16 %v42
  %v67 = vunpack.c.l.b16 %v43
  %v68 = vpack.c.b16 %v61, %v60
  %v69 = vpack.c.b16 %v63, %v62
  %v70 = vpack.c.b16 %v65, %v64
  %v71 = vpack.c.b16 %v67, %v66
  %vm72 = vcmask 31744
  %v74 = vsel %vm72, %v68, 0
  %v77 = vsel %vm72, %v69, 0
  %v80 = vsel %vm72, %v70, 0
  %v83 = vsel %vm72, %v71, 0
  %vm85 = vcmask 1041408
  %v87 = vsel %vm85, %v44, 0
  %89 = vmatprep.subr.bf16.mxu0 0
  %90 = vmatpush1.bf16.msra.mxu0 0
  %91 = vmatprep.subr.bf16.mxu0 0
  %92 = vmatpush1.bf16.msra.mxu0 0
  %93 = vmatprep.subr.bf16.mxu0 0
  %94 = vmatpush1.bf16.msra.mxu0 0
  %95 = vmatprep.subr.bf16.mxu0 0
  %96 = vmatpush1.bf16.msra.mxu0 0
  %97 = vmatprep.subr.bf16.mxu0 0
  %98 = vmatpush1.bf16.msra.mxu0 0
  %99 = vmatprep.subr.bf16.mxu0 0
  %100 = vmatpush1.bf16.msra.mxu0 0
  %101 = vmatprep.subr.bf16.mxu0 0
  %102 = vmatpush1.bf16.msra.mxu0 0
  %103 = vmatprep.subr.bf16.mxu0 0
  %104 = vmatpush1.bf16.msra.mxu0 %v87
  %105 = vmatprep.subr.bf16.mxu0 0
  %106 = vmatpush2.bf16.msra.mxu0 0
  %107 = vmatprep.subr.bf16.mxu0 0
  %108 = vmatpush2.bf16.msra.mxu0 0
  %109 = vmatprep.subr.bf16.mxu0 0
  %110 = vmatpush2.bf16.msra.mxu0 0
  %111 = vmatprep.subr.bf16.mxu0 0
  %112 = vmatpush2.bf16.msra.mxu0 0
  %113 = vmatprep.subr.bf16.mxu0 0
  %114 = vmatpush2.bf16.msra.mxu0 0
  %115 = vmatprep.subr.bf16.mxu0 0
  %116 = vmatpush2.bf16.msra.mxu0 0
  %117 = vmatprep.subr.bf16.mxu0 0
  %118 = vmatpush2.bf16.msra.mxu0 0
  %119 = vmatprep.subr.bf16.mxu0 0
  %120 = vmatpush2.bf16.msra.mxu0 0
  %121 = vmatprep.mubr.bf16.mxu0 0
  %122 = vmatmul.mubr.bf16.gmra.mxu0 %v74
  %v123 = vpop.f32.mrf.mxu0
  %v124 = vadd.f32 %v50, %v123
  %v125 = vpop.f32.mrf.mxu0
  %v126 = vpop.f32.mrf.mxu0
  %v127 = vadd.f32 %v50, %v126
  %v128 = vpop.f32.mrf.mxu0
  %129 = vmatprep.mubr.bf16.mxu0 0
  %130 = vmatmul.mubr.bf16.gmra.mxu0 %v77
  %v131 = vpop.f32.mrf.mxu0
  %v132 = vadd.f32 %v50, %v131
  %v133 = vpop.f32.mrf.mxu0
  %v134 = vpop.f32.mrf.mxu0
  %v135 = vadd.f32 %v50, %v134
  %v136 = vpop.f32.mrf.mxu0
  %137 = vmatprep.mubr.bf16.mxu0 0
  %138 = vmatmul.mubr.bf16.gmra.mxu0 %v80
  %v139 = vpop.f32.mrf.mxu0
  %v140 = vadd.f32 %v50, %v139
  %v141 = vpop.f32.mrf.mxu0
  %v142 = vpop.f32.mrf.mxu0
  %v143 = vadd.f32 %v50, %v142
  %v144 = vpop.f32.mrf.mxu0
  %145 = vmatprep.mubr.bf16.mxu0 0
  %146 = vmatmul.mubr.bf16.gmra.mxu0 %v83
  %v147 = vpop.f32.mrf.mxu0
  %v148 = vadd.f32 %v50, %v147
  %v149 = vpop.f32.mrf.mxu0
  %v150 = vpop.f32.mrf.mxu0
  %v151 = vadd.f32 %v50, %v150
  %v152 = vpop.f32.mrf.mxu0
  %153 = vdwg.mxu0
  %v158 = vunpack.c.l.b16 %v32
  %v159 = vunpack.c.l.b16 %v33
  %v160 = vunpack.c.l.b16 %v34
  %v161 = vunpack.c.l.b16 %v35
  %v162 = vpack.c.b16 %v159, %v158
  %v163 = vpack.c.b16 %v161, %v160
  %vm166 = vcmask 261120
  %v168 = vsel %vm166, 0, 0
  %170 = vmatprep.subr.bf16.mxu0 0
  %171 = vmatpush1.bf16.msra.mxu0 0
  %172 = vmatprep.subr.bf16.mxu0 0
  %173 = vmatpush1.bf16.msra.mxu0 0
  %174 = vmatprep.subr.bf16.mxu0 0
  %175 = vmatpush1.bf16.msra.mxu0 0
  %176 = vmatprep.subr.bf16.mxu0 0
  %177 = vmatpush1.bf16.msra.mxu0 0
  %178 = vmatprep.subr.bf16.mxu0 0
  %179 = vmatpush1.bf16.msra.mxu0 0
  %180 = vmatprep.subr.bf16.mxu0 0
  %181 = vmatpush1.bf16.msra.mxu0 0
  %182 = vmatprep.subr.bf16.mxu0 0
  %183 = vmatpush1.bf16.msra.mxu0 %v163
  %184 = vmatprep.subr.bf16.mxu0 0
  %185 = vmatpush1.bf16.msra.mxu0 %v162
  %186 = vmatprep.subr.bf16.mxu0 0
  %187 = vmatpush2.bf16.msra.mxu0 0
  %188 = vmatprep.subr.bf16.mxu0 0
  %189 = vmatpush2.bf16.msra.mxu0 0
  %190 = vmatprep.subr.bf16.mxu0 0
  %191 = vmatpush2.bf16.msra.mxu0 0
  %192 = vmatprep.subr.bf16.mxu0 0
  %193 = vmatpush2.bf16.msra.mxu0 0
  %194 = vmatprep.subr.bf16.mxu0 0
  %195 = vmatpush2.bf16.msra.mxu0 0
  %196 = vmatprep.subr.bf16.mxu0 0
  %197 = vmatpush2.bf16.msra.mxu0 0
  %198 = vmatprep.subr.bf16.mxu0 0
  %199 = vmatpush2.bf16.msra.mxu0 0
  %200 = vmatprep.subr.bf16.mxu0 0
  %201 = vmatpush2.bf16.msra.mxu0 0
  %202 = vmatprep.mubr.bf16.mxu0 0
  %203 = vmatmul.mubr.bf16.gmra.mxu0 %v168
  %v204 = vpop.f32.mrf.mxu0
  %v205 = vadd.f32 0.0, %v204
  %v206 = vpop.f32.mrf.mxu0
  %v207 = vpop.f32.mrf.mxu0
  %v208 = vpop.f32.mrf.mxu0
  %209 = vdwg.mxu0
  %v210 = vadd.f32 %v124, %v205
  %v211 = vxor.u32 %v210, 2147483648
  %v212 = vmul.f32 %v211, 1.442695
  %v213 = vpow.pop %v212
  %v214 = vadd.f32 %v213, 1.0
  %v215 = vrcp.pop %v214
  %v216 = vmul.f32 1.0, %v215
  %v217 = vmul.f32 %v216, 2.0
  %v218 = vsub.f32 %v217, 1.0
  %v219 = vmul.f32 %v216, 0.0
  %221 = vrot.lane.b32.xlu0 %v218, 64
  %v222 = vpop.permute.xlu0 %221
  %v224 = vmul.f32 %v216, %v222
  %226 = vrot.lane.b32.xlu0 %v224, 32
  %v227 = vpop.permute.xlu0 %226
  %v229 = vadd.f32 %v219, %v227
  %v230 = vtanh.pop %v229
  %232 = vrot.lane.b32.xlu0 %v230, 64
  %v233 = vpop.permute.xlu0 %232
  %v235 = vmul.f32 %v216, %v233
  %v236 = vpack.c.bf16 %v235, %v235
  %238 = vrot.lane.b32.xlu0 %v236, 32
  %v239 = vpop.permute.xlu0 %238
  %v241 = vsel %vm166, %v239, 0
  %243 = vmatprep.subr.bf16.mxu0 0
  %244 = vmatpush1.bf16.msra.mxu0 0
  %245 = vmatprep.subr.bf16.mxu0 0
  %246 = vmatpush1.bf16.msra.mxu0 0
  %247 = vmatprep.subr.bf16.mxu0 0
  %248 = vmatpush1.bf16.msra.mxu0 0
  %249 = vmatprep.subr.bf16.mxu0 0
  %250 = vmatpush1.bf16.msra.mxu0 0
  %251 = vmatprep.subr.bf16.mxu0 0
  %252 = vmatpush1.bf16.msra.mxu0 0
  %253 = vmatprep.subr.bf16.mxu0 0
  %254 = vmatpush1.bf16.msra.mxu0 0
  %255 = vmatprep.subr.bf16.mxu0 0
  %256 = vmatpush1.bf16.msra.mxu0 %v163
  %257 = vmatprep.subr.bf16.mxu0 0
  %258 = vmatpush1.bf16.msra.mxu0 %v162
  %259 = vmatprep.subr.bf16.mxu0 0
  %260 = vmatpush2.bf16.msra.mxu0 0
  %261 = vmatprep.subr.bf16.mxu0 0
  %262 = vmatpush2.bf16.msra.mxu0 0
  %263 = vmatprep.subr.bf16.mxu0 0
  %264 = vmatpush2.bf16.msra.mxu0 0
  %265 = vmatprep.subr.bf16.mxu0 0
  %266 = vmatpush2.bf16.msra.mxu0 0
  %267 = vmatprep.subr.bf16.mxu0 0
  %268 = vmatpush2.bf16.msra.mxu0 0
  %269 = vmatprep.subr.bf16.mxu0 0
  %270 = vmatpush2.bf16.msra.mxu0 0
  %271 = vmatprep.subr.bf16.mxu0 0
  %272 = vmatpush2.bf16.msra.mxu0 0
  %273 = vmatprep.subr.bf16.mxu0 0
  %274 = vmatpush2.bf16.msra.mxu0 0
  %275 = vmatprep.mubr.bf16.mxu0 0
  %276 = vmatmul.mubr.bf16.gmra.mxu0 %v241
  %v277 = vpop.f32.mrf.mxu0
  %v278 = vadd.f32 0.0, %v277
  %v279 = vpop.f32.mrf.mxu0
  %v280 = vpop.f32.mrf.mxu0
  %v281 = vpop.f32.mrf.mxu0
  %282 = vdwg.mxu0
  %v283 = vadd.f32 %v127, %v278
  %v284 = vxor.u32 %v283, 2147483648
  %v285 = vmul.f32 %v284, 1.442695
  %v286 = vpow.pop %v285
  %v287 = vadd.f32 %v286, 1.0
  %v288 = vrcp.pop %v287
  %v289 = vmul.f32 1.0, %v288
  %v290 = vmul.f32 %v289, 2.0
  %v291 = vsub.f32 %v290, 1.0
  %v292 = vmul.f32 %v289, %v229
  %294 = vrot.lane.b32.xlu0 %v291, 64
  %v295 = vpop.permute.xlu0 %294
  %v297 = vmul.f32 %v289, %v295
  %299 = vrot.lane.b32.xlu0 %v297, 32
  %v300 = vpop.permute.xlu0 %299
  %v302 = vadd.f32 %v292, %v300
  %v303 = vtanh.pop %v302
  %305 = vrot.lane.b32.xlu0 %v303, 64
  %v306 = vpop.permute.xlu0 %305
  %v308 = vmul.f32 %v289, %v306
  %v309 = vpack.c.bf16 %v308, %v308
  %311 = vrot.lane.b32.xlu0 %v309, 32
  %v312 = vpop.permute.xlu0 %311
  %v314 = vsel %vm166, %v312, 0
  %316 = vmatprep.subr.bf16.mxu0 0
  %317 = vmatpush1.bf16.msra.mxu0 0
  %318 = vmatprep.subr.bf16.mxu0 0
  %319 = vmatpush1.bf16.msra.mxu0 0
  %320 = vmatprep.subr.bf16.mxu0 0
  %321 = vmatpush1.bf16.msra.mxu0 0
  %322 = vmatprep.subr.bf16.mxu0 0
  %323 = vmatpush1.bf16.msra.mxu0 0
  %324 = vmatprep.subr.bf16.mxu0 0
  %325 = vmatpush1.bf16.msra.mxu0 0
  %326 = vmatprep.subr.bf16.mxu0 0
  %327 = vmatpush1.bf16.msra.mxu0 0
  %328 = vmatprep.subr.bf16.mxu0 0
  %329 = vmatpush1.bf16.msra.mxu0 %v163
  %330 = vmatprep.subr.bf16.mxu0 0
  %331 = vmatpush1.bf16.msra.mxu0 %v162
  %332 = vmatprep.subr.bf16.mxu0 0
  %333 = vmatpush2.bf16.msra.mxu0 0
  %334 = vmatprep.subr.bf16.mxu0 0
  %335 = vmatpush2.bf16.msra.mxu0 0
  %336 = vmatprep.subr.bf16.mxu0 0
  %337 = vmatpush2.bf16.msra.mxu0 0
  %338 = vmatprep.subr.bf16.mxu0 0
  %339 = vmatpush2.bf16.msra.mxu0 0
  %340 = vmatprep.subr.bf16.mxu0 0
  %341 = vmatpush2.bf16.msra.mxu0 0
  %342 = vmatprep.subr.bf16.mxu0 0
  %343 = vmatpush2.bf16.msra.mxu0 0
  %344 = vmatprep.subr.bf16.mxu0 0
  %345 = vmatpush2.bf16.msra.mxu0 0
  %346 = vmatprep.subr.bf16.mxu0 0
  %347 = vmatpush2.bf16.msra.mxu0 0
  %348 = vmatprep.mubr.bf16.mxu0 0
  %349 = vmatmul.mubr.bf16.gmra.mxu0 %v314
  %v350 = vpop.f32.mrf.mxu0
  %v351 = vadd.f32 0.0, %v350
  %v352 = vpop.f32.mrf.mxu0
  %v353 = vpop.f32.mrf.mxu0
  %v354 = vpop.f32.mrf.mxu0
  %355 = vdwg.mxu0
  %v356 = vadd.f32 %v132, %v351
  %v357 = vxor.u32 %v356, 2147483648
  %v358 = vmul.f32 %v357, 1.442695
  %v359 = vpow.pop %v358
  %v360 = vadd.f32 %v359, 1.0
  %v361 = vrcp.pop %v360
  %v362 = vmul.f32 1.0, %v361
  %v363 = vmul.f32 %v362, 2.0
  %v364 = vsub.f32 %v363, 1.0
  %v365 = vmul.f32 %v362, %v302
  %367 = vrot.lane.b32.xlu0 %v364, 64
  %v368 = vpop.permute.xlu0 %367
  %v370 = vmul.f32 %v362, %v368
  %372 = vrot.lane.b32.xlu0 %v370, 32
  %v373 = vpop.permute.xlu0 %372
  %v375 = vadd.f32 %v365, %v373
  %v376 = vtanh.pop %v375
  %378 = vrot.lane.b32.xlu0 %v376, 64
  %v379 = vpop.permute.xlu0 %378
  %v381 = vmul.f32 %v362, %v379
  %v382 = vpack.c.bf16 %v381, %v381
  %384 = vrot.lane.b32.xlu0 %v382, 32
  %v385 = vpop.permute.xlu0 %384
  %v387 = vsel %vm166, %v385, 0
  %389 = vmatprep.subr.bf16.mxu0 0
  %390 = vmatpush1.bf16.msra.mxu0 0
  %391 = vmatprep.subr.bf16.mxu0 0
  %392 = vmatpush1.bf16.msra.mxu0 0
  %393 = vmatprep.subr.bf16.mxu0 0
  %394 = vmatpush1.bf16.msra.mxu0 0
  %395 = vmatprep.subr.bf16.mxu0 0
  %396 = vmatpush1.bf16.msra.mxu0 0
  %397 = vmatprep.subr.bf16.mxu0 0
  %398 = vmatpush1.bf16.msra.mxu0 0
  %399 = vmatprep.subr.bf16.mxu0 0
  %400 = vmatpush1.bf16.msra.mxu0 0
  %401 = vmatprep.subr.bf16.mxu0 0
  %402 = vmatpush1.bf16.msra.mxu0 %v163
  %403 = vmatprep.subr.bf16.mxu0 0
  %404 = vmatpush1.bf16.msra.mxu0 %v162
  %405 = vmatprep.subr.bf16.mxu0 0
  %406 = vmatpush2.bf16.msra.mxu0 0
  %407 = vmatprep.subr.bf16.mxu0 0
  %408 = vmatpush2.bf16.msra.mxu0 0
  %409 = vmatprep.subr.bf16.mxu0 0
  %410 = vmatpush2.bf16.msra.mxu0 0
  %411 = vmatprep.subr.bf16.mxu0 0
  %412 = vmatpush2.bf16.msra.mxu0 0
  %413 = vmatprep.subr.bf16.mxu0 0
  %414 = vmatpush2.bf16.msra.mxu0 0
  %415 = vmatprep.subr.bf16.mxu0 0
  %416 = vmatpush2.bf16.msra.mxu0 0
  %417 = vmatprep.subr.bf16.mxu0 0
  %418 = vmatpush2.bf16.msra.mxu0 0
  %419 = vmatprep.subr.bf16.mxu0 0
  %420 = vmatpush2.bf16.msra.mxu0 0
  %421 = vmatprep.mubr.bf16.mxu0 0
  %422 = vmatmul.mubr.bf16.gmra.mxu0 %v387
  %v423 = vpop.f32.mrf.mxu0
  %v424 = vadd.f32 0.0, %v423
  %v425 = vpop.f32.mrf.mxu0
  %v426 = vpop.f32.mrf.mxu0
  %v427 = vpop.f32.mrf.mxu0
  %428 = vdwg.mxu0
  %v429 = vadd.f32 %v135, %v424
  %v430 = vxor.u32 %v429, 2147483648
  %v431 = vmul.f32 %v430, 1.442695
  %v432 = vpow.pop %v431
  %v433 = vadd.f32 %v432, 1.0
  %v434 = vrcp.pop %v433
  %v435 = vmul.f32 1.0, %v434
  %v436 = vmul.f32 %v435, 2.0
  %v437 = vsub.f32 %v436, 1.0
  %v438 = vmul.f32 %v435, %v375
  %440 = vrot.lane.b32.xlu0 %v437, 64
  %v441 = vpop.permute.xlu0 %440
  %v443 = vmul.f32 %v435, %v441
  %445 = vrot.lane.b32.xlu0 %v443, 32
  %v446 = vpop.permute.xlu0 %445
  %v448 = vadd.f32 %v438, %v446
  %v449 = vtanh.pop %v448
  %451 = vrot.lane.b32.xlu0 %v449, 64
  %v452 = vpop.permute.xlu0 %451
  %v454 = vmul.f32 %v435, %v452
  %v455 = vpack.c.bf16 %v454, %v454
  %457 = vrot.lane.b32.xlu0 %v455, 32
  %v458 = vpop.permute.xlu0 %457
  %v460 = vsel %vm166, %v458, 0
  %462 = vmatprep.subr.bf16.mxu0 0
  %463 = vmatpush1.bf16.msra.mxu0 0
  %464 = vmatprep.subr.bf16.mxu0 0
  %465 = vmatpush1.bf16.msra.mxu0 0
  %466 = vmatprep.subr.bf16.mxu0 0
  %467 = vmatpush1.bf16.msra.mxu0 0
  %468 = vmatprep.subr.bf16.mxu0 0
  %469 = vmatpush1.bf16.msra.mxu0 0
  %470 = vmatprep.subr.bf16.mxu0 0
  %471 = vmatpush1.bf16.msra.mxu0 0
  %472 = vmatprep.subr.bf16.mxu0 0
  %473 = vmatpush1.bf16.msra.mxu0 0
  %474 = vmatprep.subr.bf16.mxu0 0
  %475 = vmatpush1.bf16.msra.mxu0 %v163
  %476 = vmatprep.subr.bf16.mxu0 0
  %477 = vmatpush1.bf16.msra.mxu0 %v162
  %478 = vmatprep.subr.bf16.mxu0 0
  %479 = vmatpush2.bf16.msra.mxu0 0
  %480 = vmatprep.subr.bf16.mxu0 0
  %481 = vmatpush2.bf16.msra.mxu0 0
  %482 = vmatprep.subr.bf16.mxu0 0
  %483 = vmatpush2.bf16.msra.mxu0 0
  %484 = vmatprep.subr.bf16.mxu0 0
  %485 = vmatpush2.bf16.msra.mxu0 0
  %486 = vmatprep.subr.bf16.mxu0 0
  %487 = vmatpush2.bf16.msra.mxu0 0
  %488 = vmatprep.subr.bf16.mxu0 0
  %489 = vmatpush2.bf16.msra.mxu0 0
  %490 = vmatprep.subr.bf16.mxu0 0
  %491 = vmatpush2.bf16.msra.mxu0 0
  %492 = vmatprep.subr.bf16.mxu0 0
  %493 = vmatpush2.bf16.msra.mxu0 0
  %494 = vmatprep.mubr.bf16.mxu0 0
  %495 = vmatmul.mubr.bf16.gmra.mxu0 %v460
  %v496 = vpop.f32.mrf.mxu0
  %v497 = vadd.f32 0.0, %v496
  %v498 = vpop.f32.mrf.mxu0
  %v499 = vpop.f32.mrf.mxu0
  %v500 = vpop.f32.mrf.mxu0
  %501 = vdwg.mxu0
  %v502 = vadd.f32 %v140, %v497
  %v503 = vxor.u32 %v502, 2147483648
  %v504 = vmul.f32 %v503, 1.442695
  %v505 = vpow.pop %v504
  %v506 = vadd.f32 %v505, 1.0
  %v507 = vrcp.pop %v506
  %v508 = vmul.f32 1.0, %v507
  %v509 = vmul.f32 %v508, 2.0
  %v510 = vsub.f32 %v509, 1.0
  %v511 = vmul.f32 %v508, %v448
  %513 = vrot.lane.b32.xlu0 %v510, 64
  %v514 = vpop.permute.xlu0 %513
  %v516 = vmul.f32 %v508, %v514
  %518 = vrot.lane.b32.xlu0 %v516, 32
  %v519 = vpop.permute.xlu0 %518
  %v521 = vadd.f32 %v511, %v519
  %v522 = vtanh.pop %v521
  %524 = vrot.lane.b32.xlu0 %v522, 64
  %v525 = vpop.permute.xlu0 %524
  %v527 = vmul.f32 %v508, %v525
  %v528 = vpack.c.bf16 %v527, %v527
  %530 = vrot.lane.b32.xlu0 %v528, 32
  %v531 = vpop.permute.xlu0 %530
  %v533 = vsel %vm166, %v531, 0
  %535 = vmatprep.subr.bf16.mxu0 0
  %536 = vmatpush1.bf16.msra.mxu0 0
  %537 = vmatprep.subr.bf16.mxu0 0
  %538 = vmatpush1.bf16.msra.mxu0 0
  %539 = vmatprep.subr.bf16.mxu0 0
  %540 = vmatpush1.bf16.msra.mxu0 0
  %541 = vmatprep.subr.bf16.mxu0 0
  %542 = vmatpush1.bf16.msra.mxu0 0
  %543 = vmatprep.subr.bf16.mxu0 0
  %544 = vmatpush1.bf16.msra.mxu0 0
  %545 = vmatprep.subr.bf16.mxu0 0
  %546 = vmatpush1.bf16.msra.mxu0 0
  %547 = vmatprep.subr.bf16.mxu0 0
  %548 = vmatpush1.bf16.msra.mxu0 %v163
  %549 = vmatprep.subr.bf16.mxu0 0
  %550 = vmatpush1.bf16.msra.mxu0 %v162
  %551 = vmatprep.subr.bf16.mxu0 0
  %552 = vmatpush2.bf16.msra.mxu0 0
  %553 = vmatprep.subr.bf16.mxu0 0
  %554 = vmatpush2.bf16.msra.mxu0 0
  %555 = vmatprep.subr.bf16.mxu0 0
  %556 = vmatpush2.bf16.msra.mxu0 0
  %557 = vmatprep.subr.bf16.mxu0 0
  %558 = vmatpush2.bf16.msra.mxu0 0
  %559 = vmatprep.subr.bf16.mxu0 0
  %560 = vmatpush2.bf16.msra.mxu0 0
  %561 = vmatprep.subr.bf16.mxu0 0
  %562 = vmatpush2.bf16.msra.mxu0 0
  %563 = vmatprep.subr.bf16.mxu0 0
  %564 = vmatpush2.bf16.msra.mxu0 0
  %565 = vmatprep.subr.bf16.mxu0 0
  %566 = vmatpush2.bf16.msra.mxu0 0
  %567 = vmatprep.mubr.bf16.mxu0 0
  %568 = vmatmul.mubr.bf16.gmra.mxu0 %v533
  %v569 = vpop.f32.mrf.mxu0
  %v570 = vadd.f32 0.0, %v569
  %v571 = vpop.f32.mrf.mxu0
  %v572 = vpop.f32.mrf.mxu0
  %v573 = vpop.f32.mrf.mxu0
  %574 = vdwg.mxu0
  %v575 = vadd.f32 %v143, %v570
  %v576 = vxor.u32 %v575, 2147483648
  %v577 = vmul.f32 %v576, 1.442695
  %v578 = vpow.pop %v577
  %v579 = vadd.f32 %v578, 1.0
  %v580 = vrcp.pop %v579
  %v581 = vmul.f32 1.0, %v580
  %v582 = vmul.f32 %v581, 2.0
  %v583 = vsub.f32 %v582, 1.0
  %v584 = vmul.f32 %v581, %v521
  %586 = vrot.lane.b32.xlu0 %v583, 64
  %v587 = vpop.permute.xlu0 %586
  %v589 = vmul.f32 %v581, %v587
  %591 = vrot.lane.b32.xlu0 %v589, 32
  %v592 = vpop.permute.xlu0 %591
  %v594 = vadd.f32 %v584, %v592
  %v595 = vtanh.pop %v594
  %597 = vrot.lane.b32.xlu0 %v595, 64
  %v598 = vpop.permute.xlu0 %597
  %v600 = vmul.f32 %v581, %v598
  %v601 = vpack.c.bf16 %v600, %v600
  %603 = vrot.lane.b32.xlu0 %v601, 32
  %v604 = vpop.permute.xlu0 %603
  %v606 = vsel %vm166, %v604, 0
  %608 = vmatprep.subr.bf16.mxu0 0
  %609 = vmatpush1.bf16.msra.mxu0 0
  %610 = vmatprep.subr.bf16.mxu0 0
  %611 = vmatpush1.bf16.msra.mxu0 0
  %612 = vmatprep.subr.bf16.mxu0 0
  %613 = vmatpush1.bf16.msra.mxu0 0
  %614 = vmatprep.subr.bf16.mxu0 0
  %615 = vmatpush1.bf16.msra.mxu0 0
  %616 = vmatprep.subr.bf16.mxu0 0
  %617 = vmatpush1.bf16.msra.mxu0 0
  %618 = vmatprep.subr.bf16.mxu0 0
  %619 = vmatpush1.bf16.msra.mxu0 0
  %620 = vmatprep.subr.bf16.mxu0 0
  %621 = vmatpush1.bf16.msra.mxu0 %v163
  %622 = vmatprep.subr.bf16.mxu0 0
  %623 = vmatpush1.bf16.msra.mxu0 %v162
  %624 = vmatprep.subr.bf16.mxu0 0
  %625 = vmatpush2.bf16.msra.mxu0 0
  %626 = vmatprep.subr.bf16.mxu0 0
  %627 = vmatpush2.bf16.msra.mxu0 0
  %628 = vmatprep.subr.bf16.mxu0 0
  %629 = vmatpush2.bf16.msra.mxu0 0
  %630 = vmatprep.subr.bf16.mxu0 0
  %631 = vmatpush2.bf16.msra.mxu0 0
  %632 = vmatprep.subr.bf16.mxu0 0
  %633 = vmatpush2.bf16.msra.mxu0 0
  %634 = vmatprep.subr.bf16.mxu0 0
  %635 = vmatpush2.bf16.msra.mxu0 0
  %636 = vmatprep.subr.bf16.mxu0 0
  %637 = vmatpush2.bf16.msra.mxu0 0
  %638 = vmatprep.subr.bf16.mxu0 0
  %639 = vmatpush2.bf16.msra.mxu0 0
  %640 = vmatprep.mubr.bf16.mxu0 0
  %641 = vmatmul.mubr.bf16.gmra.mxu0 %v606
  %v642 = vpop.f32.mrf.mxu0
  %v643 = vadd.f32 0.0, %v642
  %v644 = vpop.f32.mrf.mxu0
  %v645 = vpop.f32.mrf.mxu0
  %v646 = vpop.f32.mrf.mxu0
  %647 = vdwg.mxu0
  %v648 = vadd.f32 %v148, %v643
  %v649 = vxor.u32 %v648, 2147483648
  %v650 = vmul.f32 %v649, 1.442695
  %v651 = vpow.pop %v650
  %v652 = vadd.f32 %v651, 1.0
  %v653 = vrcp.pop %v652
  %v654 = vmul.f32 1.0, %v653
  %v655 = vmul.f32 %v654, 2.0
  %v656 = vsub.f32 %v655, 1.0
  %v657 = vmul.f32 %v654, %v594
  %659 = vrot.lane.b32.xlu0 %v656, 64
  %v660 = vpop.permute.xlu0 %659
  %v662 = vmul.f32 %v654, %v660
  %664 = vrot.lane.b32.xlu0 %v662, 32
  %v665 = vpop.permute.xlu0 %664
  %v667 = vadd.f32 %v657, %v665
  %v668 = vtanh.pop %v667
  %670 = vrot.lane.b32.xlu0 %v668, 64
  %v671 = vpop.permute.xlu0 %670
  %v673 = vmul.f32 %v654, %v671
  %v674 = vpack.c.bf16 %v673, %v673
  %676 = vrot.lane.b32.xlu0 %v674, 32
  %v677 = vpop.permute.xlu0 %676
  %v679 = vsel %vm166, %v677, 0
  %681 = vmatprep.subr.bf16.mxu0 0
  %682 = vmatpush1.bf16.msra.mxu0 0
  %683 = vmatprep.subr.bf16.mxu0 0
  %684 = vmatpush1.bf16.msra.mxu0 0
  %685 = vmatprep.subr.bf16.mxu0 0
  %686 = vmatpush1.bf16.msra.mxu0 0
  %687 = vmatprep.subr.bf16.mxu0 0
  %688 = vmatpush1.bf16.msra.mxu0 0
  %689 = vmatprep.subr.bf16.mxu0 0
  %690 = vmatpush1.bf16.msra.mxu0 0
  %691 = vmatprep.subr.bf16.mxu0 0
  %692 = vmatpush1.bf16.msra.mxu0 0
  %693 = vmatprep.subr.bf16.mxu0 0
  %694 = vmatpush1.bf16.msra.mxu0 %v163
  %695 = vmatprep.subr.bf16.mxu0 0
  %696 = vmatpush1.bf16.msra.mxu0 %v162
  %697 = vmatprep.subr.bf16.mxu0 0
  %698 = vmatpush2.bf16.msra.mxu0 0
  %699 = vmatprep.subr.bf16.mxu0 0
  %700 = vmatpush2.bf16.msra.mxu0 0
  %701 = vmatprep.subr.bf16.mxu0 0
  %702 = vmatpush2.bf16.msra.mxu0 0
  %703 = vmatprep.subr.bf16.mxu0 0
  %704 = vmatpush2.bf16.msra.mxu0 0
  %705 = vmatprep.subr.bf16.mxu0 0
  %706 = vmatpush2.bf16.msra.mxu0 0
  %707 = vmatprep.subr.bf16.mxu0 0
  %708 = vmatpush2.bf16.msra.mxu0 0
  %709 = vmatprep.subr.bf16.mxu0 0
  %710 = vmatpush2.bf16.msra.mxu0 0
  %711 = vmatprep.subr.bf16.mxu0 0
  %712 = vmatpush2.bf16.msra.mxu0 0
  %713 = vmatprep.mubr.bf16.mxu0 0
  %714 = vmatmul.mubr.bf16.gmra.mxu0 %v679
  %v715 = vpop.f32.mrf.mxu0
  %v716 = vadd.f32 0.0, %v715
  %v717 = vpop.f32.mrf.mxu0
  %v718 = vpop.f32.mrf.mxu0
  %v719 = vpop.f32.mrf.mxu0
  %720 = vdwg.mxu0
  %v721 = vadd.f32 %v151, %v716
  %v722 = vxor.u32 %v721, 2147483648
  %v723 = vmul.f32 %v722, 1.442695
  %v724 = vpow.pop %v723
  %v725 = vadd.f32 %v724, 1.0
  %v726 = vrcp.pop %v725
  %v727 = vmul.f32 1.0, %v726
  %v728 = vmul.f32 %v727, 2.0
  %v729 = vsub.f32 %v728, 1.0
  %v730 = vmul.f32 %v727, %v667
  %732 = vrot.lane.b32.xlu0 %v729, 64
  %v733 = vpop.permute.xlu0 %732
  %v735 = vmul.f32 %v727, %v733
  %737 = vrot.lane.b32.xlu0 %v735, 32
  %v738 = vpop.permute.xlu0 %737
  %v740 = vadd.f32 %v730, %v738
  %v741 = vtanh.pop %v740
  %743 = vrot.lane.b32.xlu0 %v741, 64
  %v744 = vpop.permute.xlu0 %743
  %v746 = vmul.f32 %v727, %v744
  %v747 = vpack.c.bf16 %v746, %v746
  %v748 = vld [vmem:[%s4] sm:$0xf]
  %v749 = vld [vmem:[%s4 + $0x4] sm:$0xf]
  %v750 = vld [vmem:[%s4 + $0x8] sm:$0xf]
  %v751 = vld [vmem:[%s4 + $0xc] sm:$0xf]
  %v752 = vld [vmem:[%s5] sm:$0x1]
  %v754 = vlaneseq
  %v755 = vshrl.u32 %v754, 7
  %v756 = vsub.s32 0, %v755
  %v757 = vrot.slane %v752, %v756
  %760 = vrot.lane.b32.xlu0 %v747, 32
  %v761 = vpop.permute.xlu0 %760
  %v766 = vunpack.c.l.b16 %v748
  %v767 = vunpack.c.l.b16 %v749
  %v768 = vunpack.c.l.b16 %v750
  %v769 = vunpack.c.l.b16 %v751
  %v770 = vpack.c.b16 %v767, %v766
  %v771 = vpack.c.b16 %v769, %v768
  %v775 = vsel %vm166, %v761, 0
  %777 = vmatprep.subr.bf16.mxu0 0
  %778 = vmatpush1.bf16.msra.mxu0 0
  %779 = vmatprep.subr.bf16.mxu0 0
  %780 = vmatpush1.bf16.msra.mxu0 0
  %781 = vmatprep.subr.bf16.mxu0 0
  %782 = vmatpush1.bf16.msra.mxu0 0
  %783 = vmatprep.subr.bf16.mxu0 0
  %784 = vmatpush1.bf16.msra.mxu0 0
  %785 = vmatprep.subr.bf16.mxu0 0
  %786 = vmatpush1.bf16.msra.mxu0 0
  %787 = vmatprep.subr.bf16.mxu0 0
  %788 = vmatpush1.bf16.msra.mxu0 0
  %789 = vmatprep.subr.bf16.mxu0 0
  %790 = vmatpush1.bf16.msra.mxu0 %v771
  %791 = vmatprep.subr.bf16.mxu0 0
  %792 = vmatpush1.bf16.msra.mxu0 %v770
  %793 = vmatprep.subr.bf16.mxu0 0
  %794 = vmatpush2.bf16.msra.mxu0 0
  %795 = vmatprep.subr.bf16.mxu0 0
  %796 = vmatpush2.bf16.msra.mxu0 0
  %797 = vmatprep.subr.bf16.mxu0 0
  %798 = vmatpush2.bf16.msra.mxu0 0
  %799 = vmatprep.subr.bf16.mxu0 0
  %800 = vmatpush2.bf16.msra.mxu0 0
  %801 = vmatprep.subr.bf16.mxu0 0
  %802 = vmatpush2.bf16.msra.mxu0 0
  %803 = vmatprep.subr.bf16.mxu0 0
  %804 = vmatpush2.bf16.msra.mxu0 0
  %805 = vmatprep.subr.bf16.mxu0 0
  %806 = vmatpush2.bf16.msra.mxu0 0
  %807 = vmatprep.subr.bf16.mxu0 0
  %808 = vmatpush2.bf16.msra.mxu0 0
  %809 = vmatprep.mubr.bf16.mxu0 0
  %810 = vmatmul.mubr.bf16.gmra.mxu0 %v775
  %v811 = vpop.f32.mrf.mxu0
  %v812 = vadd.f32 %v757, %v811
  %v813 = vpop.f32.mrf.mxu0
  %v814 = vpop.f32.mrf.mxu0
  %v815 = vpop.f32.mrf.mxu0
  %816 = vdwg.mxu0
  %v817 = vmax.f32 %v812, 0.0
  %v818 = vld [vmem:[%s6] sm:$0x1]
  %v820 = vlaneseq
  %v821 = vshrl.u32 %v820, 7
  %v822 = vsub.s32 0, %v821
  %v823 = vrot.slane %v818, %v822
  %v825 = vmul.f32 %v817, %v823
  %v826 = vsel %vm166, %v825, 0.0
  %827 = vadd.xlane.f32.xlu0 %v826
  %v828 = vpop.xlane.xlu0 %827
  %v829 = vld [vmem:[#allocation2] sm:$0x1]
  %v831 = vlaneseq
  %v832 = vshrl.u32 %v831, 7
  %v833 = vsub.s32 0, %v832
  %v834 = vrot.slane %v829, %v833
  %v836 = vadd.f32 %v828, %v834
  %vm837 = vcmask 7168
  %838 = vst.msk [vmem:[%s8] sm:$0xff] %vm837, %v836
  // Predicated region
  $region34: #{tpu_custom_call.1} parent=0 // pred_check
    _
  $region35: #{tpu_custom_call.1} parent=0 // pred_check_branch
    %840 = sbr.rel (0) target = $region37
  $region36: #{tpu_custom_call.1} parent=0 // pred_region
    _
  $region37: #{tpu_custom_call.1} parent=0 // pred_fallthru
    _
  // Predicated region
  $region38: #{tpu_custom_call.1} parent=0 // pred_check
    _
  $region39: #{tpu_custom_call.1} parent=0 // pred_check_branch
    %842 = sbr.rel (0) target = $region41
  $region40: #{tpu_custom_call.1} parent=0 // pred_region
    _
  $region41: #{tpu_custom_call.1} parent=0 // pred_fallthru
    _

</llo_original>
